<compile_context>
chip_gen: v5e
topology: v5e:2x2
jax: 0.10.0
libtpu: 0.0.40
codegen_flags: <defaults>
</compile_context>

<pallas_src>
import numpy as np
import jax
import jax.numpy as jnp
from jax import lax
from jax.experimental import pallas as pl
from jax.experimental.pallas import tpu as pltpu


def _largest_divisor_leq(n, cap):
    """Largest divisor of n that is <= cap (cap clamped to [1, n])."""
    cap = max(1, min(int(cap), int(n)))
    for d in range(cap, 0, -1):
        if n % d == 0:
            return d
    return 1


def _complex_mode_matmul_kernel(xr_ref, xi_ref, wr_ref, wi_ref, or_ref, oi_ref):
    # xr/xi: (mt, B, Ci), wr/wi: (mt, Ci, Co), or/oi: (mt, B, Co) float32.
    # Batched over the mode block; complex product as 4 real MXU matmuls with
    # f32 accumulation.  No weight duplication, no K/N padding.
    dn = (((2,), (1,)), ((0,), (0,)))  # contract Ci; batch over modes
    xr = xr_ref[...]
    xi = xi_ref[...]
    wr = wr_ref[...]
    wi = wi_ref[...]
    rr = lax.dot_general(xr, wr, dn, preferred_element_type=jnp.float32)
    ii = lax.dot_general(xi, wi, dn, preferred_element_type=jnp.float32)
    ri = lax.dot_general(xr, wi, dn, preferred_element_type=jnp.float32)
    ir = lax.dot_general(xi, wr, dn, preferred_element_type=jnp.float32)
    or_ref[...] = rr - ii
    oi_ref[...] = ri + ir


def _per_mode_complex_matmul(xr, xi, wr, wi):
    """Per-mode complex contraction on the MXU.

    xr, xi : (M, B, Ci)  real/imag of the gathered Fourier modes
    wr, wi : (M, Ci, Co) real/imag of the packed spectral weights
    returns (out_r, out_i), each (M, B, Co) float32, with
        out[m] = x[m] @ w[m]   (complex, computed as real block products)
    """
    M, B, Ci = xr.shape
    Co = wr.shape[-1]

    x_bytes = B * Ci * xr.dtype.itemsize
    w_bytes = Ci * Co * wr.dtype.itemsize
    o_bytes = B * Co * 4
    per_mode_bytes = 2 * (x_bytes + w_bytes + o_bytes)  # real + imag streams

    # Mode-block size mt: must divide M (no zero-padded modes), keep >= 8 grid
    # steps when M allows (>= 4 per v7x TensorCore so DMA/compute overlap and
    # the megacore split stay healthy), and cap the double-buffered working set
    # at ~16 MiB -- comfortably inside v5e/v6e/v7x scoped-VMEM budgets.
    budget = 16 * 1024 * 1024
    mt_cap = max(1, min(budget // (2 * per_mode_bytes), pl.cdiv(M, 8)))
    mt = _largest_divisor_leq(M, mt_cap)
    n_steps = M // mt

    vmem_needed = 2 * mt * per_mode_bytes  # double-buffered in/out blocks
    vmem_limit = int(min(30 * 1024 * 1024,
                         max(vmem_needed + 4 * 1024 * 1024, 8 * 1024 * 1024)))

    x_spec = pl.BlockSpec((mt, B, Ci), lambda m: (m, 0, 0))
    w_spec = pl.BlockSpec((mt, Ci, Co), lambda m: (m, 0, 0))
    o_spec = pl.BlockSpec((mt, B, Co), lambda m: (m, 0, 0))

    out_r, out_i = pl.pallas_call(
        _complex_mode_matmul_kernel,
        out_shape=(jax.ShapeDtypeStruct((M, B, Co), jnp.float32),
                   jax.ShapeDtypeStruct((M, B, Co), jnp.float32)),
        grid=(n_steps,),
        in_specs=[x_spec, x_spec, w_spec, w_spec],
        out_specs=(o_spec, o_spec),
        compiler_params=pltpu.CompilerParams(
            dimension_semantics=("parallel",),
            vmem_limit_bytes=vmem_limit,
        ),
    )(xr, xi, wr, wi)
    return out_r, out_i


def pack_spectral_weights(weights1, weights2, compute_dtype=jnp.bfloat16):
    """Hoisted (call ONCE, weights are parameters): complex (Ci,Co,m1,m2) x2
    -> (wr, wi), each (M, Ci, Co) in compute_dtype, mode-major ordering
    matching the x-side gather (low-frequency corner rows first, then high)."""
    Ci, Co, m1, m2 = weights1.shape
    wc = jnp.concatenate([weights1, weights2], axis=2)            # (Ci, Co, 2m1, m2)
    wk = jnp.transpose(wc, (2, 3, 0, 1)).reshape(2 * m1 * m2, Ci, Co)
    wr = jnp.real(wk).astype(compute_dtype)
    wi = jnp.imag(wk).astype(compute_dtype)
    return wr, wi


def spectral_conv2d(x, wr, wi, modes1, modes2):
    """Forward pass of SpectralConv2d.

    x      : (B, Cin, H, W) float32
    wr, wi : (M, Cin, Cout) packed weights from pack_spectral_weights()
    returns: (B, Cout, H, W) float32
    """
    B, Ci, H, W = x.shape
    Co = wr.shape[-1]
    m1, m2 = modes1, modes2
    assert 2 * m1 <= H and m2 <= W // 2 + 1, "modes exceed available frequencies"
    M = 2 * m1 * m2
    cdtype = wr.dtype

    # TODO(synk): rfft2/irfft2 have no Pallas TPU primitive; they stay in XLA.
    x_ft = jnp.fft.rfft2(x)                                        # (B, Ci, H, W//2+1) c64

    # Gather the two retained frequency corners, relayout ONCE to mode-major
    # (M, B, Ci), split into real/imag planes in the compute dtype.
    # TODO(synk): this gather/pack glue could be fused into the pallas_call via
    # Element/scalar-prefetch index maps; minor win, left in XLA for clarity.
    xc = jnp.concatenate(
        [x_ft[:, :, :m1, :m2], x_ft[:, :, H - m1:, :m2]], axis=2)  # (B, Ci, 2m1, m2)
    xk = jnp.transpose(xc, (2, 3, 0, 1)).reshape(M, B, Ci)         # complex (M, B, Ci)
    xr = jnp.real(xk).astype(cdtype)
    xi = jnp.imag(xk).astype(cdtype)

    out_r, out_i = _per_mode_complex_matmul(xr, xi, wr, wi)        # (M, B, Co) f32 each
    out_c = jax.lax.complex(out_r, out_i)                          # (M, B, Co) c64
    out_c = out_c.reshape(2 * m1, m2, B, Co).transpose(2, 3, 0, 1)  # (B, Co, 2m1, m2)

    Wf = W // 2 + 1
    out_ft = jnp.zeros((B, Co, H, Wf), dtype=jnp.complex64)
    out_ft = out_ft.at[:, :, :m1, :m2].set(out_c[:, :, :m1, :])
    out_ft = out_ft.at[:, :, H - m1:, :m2].set(out_c[:, :, m1:, :])

    y = jnp.fft.irfft2(out_ft, s=(H, W))                           # (B, Co, H, W) float32
    return y.astype(x.dtype)


def _reference(x, w1, w2, m1, m2):
    """Pure-JAX reference mirroring the PyTorch forward exactly."""
    B, Ci, H, W = x.shape
    Co = w1.shape[1]
    x_ft = jnp.fft.rfft2(x)
    out_ft = jnp.zeros((B, Co, H, W // 2 + 1), dtype=jnp.complex64)
    out_ft = out_ft.at[:, :, :m1, :m2].set(
        jnp.einsum('bixy,ioxy->boxy', x_ft[:, :, :m1, :m2], w1))
    out_ft = out_ft.at[:, :, H - m1:, :m2].set(
        jnp.einsum('bixy,ioxy->boxy', x_ft[:, :, H - m1:, :m2], w2))
    return jnp.fft.irfft2(out_ft, s=(H, W))


if __name__ == "__main__":
    # Small shapes consistent with the module.
    B, Ci, Co, H, W = 2, 4, 4, 16, 16
    m1 = m2 = 4

    key = jax.random.PRNGKey(0)
    k_x, k_w1r, k_w1i, k_w2r, k_w2i = jax.random.split(key, 5)

    # Deterministic params: scale * U[0,1) for real and imaginary parts,
    # mirroring `scale * torch.rand(..., dtype=torch.cfloat)`.
    scale = 1.0 / (Ci * Co)
    x = jax.random.normal(k_x, (B, Ci, H, W), dtype=jnp.float32)
    w1 = jax.lax.complex(
        scale * jax.random.uniform(k_w1r, (Ci, Co, m1, m2), dtype=jnp.float32),
        scale * jax.random.uniform(k_w1i, (Ci, Co, m1, m2), dtype=jnp.float32))
    w2 = jax.lax.complex(
        scale * jax.random.uniform(k_w2r, (Ci, Co, m1, m2), dtype=jnp.float32),
        scale * jax.random.uniform(k_w2i, (Ci, Co, m1, m2), dtype=jnp.float32))

    y_ref = jax.block_until_ready(_reference(x, w1, w2, m1, m2))

    # Float32 operand path: exact-semantics check against the reference.
    wr32, wi32 = pack_spectral_weights(w1, w2, compute_dtype=jnp.float32)
    y32 = jax.block_until_ready(spectral_conv2d(x, wr32, wi32, m1, m2))
    assert y32.shape == (B, Co, H, W), y32.shape
    np.testing.assert_allclose(np.asarray(y32), np.asarray(y_ref),
                               rtol=1e-4, atol=1e-5)

    # bfloat16 operand path (default production path per review): halves HBM
    # traffic; f32 MXU accumulation. Looser tolerance accounts for the bf16
    # rounding of FFT-scale operands.
    wrb, wib = pack_spectral_weights(w1, w2, compute_dtype=jnp.bfloat16)
    ybf = jax.block_until_ready(spectral_conv2d(x, wrb, wib, m1, m2))
    assert ybf.shape == (B, Co, H, W), ybf.shape
    np.testing.assert_allclose(np.asarray(ybf), np.asarray(y_ref),
                               rtol=5e-2, atol=1e-2)

    print("KERNEL_OK")
</pallas_src>

<mosaic_0001>
module attributes {stable_mosaic.version = 11 : i64} {
  func.func @_complex_mode_matmul_kernel(%arg0: i32, %arg1: memref<4x2x4xf32, #tpu.memory_space<vmem>>, %arg2: memref<4x2x4xf32, #tpu.memory_space<vmem>>, %arg3: memref<4x4x4xf32, #tpu.memory_space<vmem>>, %arg4: memref<4x4x4xf32, #tpu.memory_space<vmem>>, %arg5: memref<4x2x4xf32, #tpu.memory_space<vmem>>, %arg6: memref<4x2x4xf32, #tpu.memory_space<vmem>>) attributes {dimension_semantics = [#tpu.dimension_semantics<parallel>], iteration_bounds = array<i64: 8>, scalar_prefetch = 0 : i64, scratch_operands = 0 : i64, tpu.core_type = #tpu.core_type<tc>, window_params = [{transform_indices = @transform_0, window_bounds = array<i64: 4, 2, 4>}, {transform_indices = @transform_1, window_bounds = array<i64: 4, 2, 4>}, {transform_indices = @transform_2, window_bounds = array<i64: 4, 4, 4>}, {transform_indices = @transform_3, window_bounds = array<i64: 4, 4, 4>}, {transform_indices = @transform_4, window_bounds = array<i64: 4, 2, 4>}, {transform_indices = @transform_5, window_bounds = array<i64: 4, 2, 4>}]} {
    %c0 = arith.constant 0 : index
    %c0_0 = arith.constant 0 : index
    %c0_1 = arith.constant 0 : index
    %0 = vector.load %arg1[%c0, %c0_0, %c0_1] : memref<4x2x4xf32, #tpu.memory_space<vmem>>, vector<4x2x4xf32>
    %c0_2 = arith.constant 0 : index
    %c0_3 = arith.constant 0 : index
    %c0_4 = arith.constant 0 : index
    %1 = vector.load %arg2[%c0_2, %c0_3, %c0_4] : memref<4x2x4xf32, #tpu.memory_space<vmem>>, vector<4x2x4xf32>
    %c0_5 = arith.constant 0 : index
    %c0_6 = arith.constant 0 : index
    %c0_7 = arith.constant 0 : index
    %2 = vector.load %arg3[%c0_5, %c0_6, %c0_7] : memref<4x4x4xf32, #tpu.memory_space<vmem>>, vector<4x4x4xf32>
    %c0_8 = arith.constant 0 : index
    %c0_9 = arith.constant 0 : index
    %c0_10 = arith.constant 0 : index
    %3 = vector.load %arg4[%c0_8, %c0_9, %c0_10] : memref<4x4x4xf32, #tpu.memory_space<vmem>>, vector<4x4x4xf32>
    %cst = arith.constant dense<0.000000e+00> : vector<4x2x4xf32>
    %4 = tpu.matmul %0, %2, %cst {dimension_numbers = #tpu.dot_dimension_numbers<[2], [1], [1], [2], [0, 0, 0, 1, 1, 2], [0], [0]>} : vector<4x2x4xf32>, vector<4x4x4xf32>, vector<4x2x4xf32> -> vector<4x2x4xf32>
    %cst_11 = arith.constant dense<0.000000e+00> : vector<4x2x4xf32>
    %5 = tpu.matmul %1, %3, %cst_11 {dimension_numbers = #tpu.dot_dimension_numbers<[2], [1], [1], [2], [0, 0, 0, 1, 1, 2], [0], [0]>} : vector<4x2x4xf32>, vector<4x4x4xf32>, vector<4x2x4xf32> -> vector<4x2x4xf32>
    %cst_12 = arith.constant dense<0.000000e+00> : vector<4x2x4xf32>
    %6 = tpu.matmul %0, %3, %cst_12 {dimension_numbers = #tpu.dot_dimension_numbers<[2], [1], [1], [2], [0, 0, 0, 1, 1, 2], [0], [0]>} : vector<4x2x4xf32>, vector<4x4x4xf32>, vector<4x2x4xf32> -> vector<4x2x4xf32>
    %cst_13 = arith.constant dense<0.000000e+00> : vector<4x2x4xf32>
    %7 = tpu.matmul %1, %2, %cst_13 {dimension_numbers = #tpu.dot_dimension_numbers<[2], [1], [1], [2], [0, 0, 0, 1, 1, 2], [0], [0]>} : vector<4x2x4xf32>, vector<4x4x4xf32>, vector<4x2x4xf32> -> vector<4x2x4xf32>
    %8 = arith.subf %4, %5 : vector<4x2x4xf32>
    %c0_14 = arith.constant 0 : index
    %c0_15 = arith.constant 0 : index
    %c0_16 = arith.constant 0 : index
    %9 = vector.load %arg5[%c0_14, %c0_15, %c0_16] : memref<4x2x4xf32, #tpu.memory_space<vmem>>, vector<4x2x4xf32>
    tpu.vector_store %arg5[%c0_14, %c0_15, %c0_16], %8 {strides = array<i32>} : memref<4x2x4xf32, #tpu.memory_space<vmem>>, vector<4x2x4xf32>,
    %10 = arith.addf %6, %7 : vector<4x2x4xf32>
    %c0_17 = arith.constant 0 : index
    %c0_18 = arith.constant 0 : index
    %c0_19 = arith.constant 0 : index
    %11 = vector.load %arg6[%c0_17, %c0_18, %c0_19] : memref<4x2x4xf32, #tpu.memory_space<vmem>>, vector<4x2x4xf32>
    tpu.vector_store %arg6[%c0_17, %c0_18, %c0_19], %10 {strides = array<i32>} : memref<4x2x4xf32, #tpu.memory_space<vmem>>, vector<4x2x4xf32>,
    return
  }
  func.func @transform_0(%arg0: i32) -> (i32, i32, i32) {
    %c0_i32 = arith.constant 0 : i32
    %c0_i32_0 = arith.constant 0 : i32
    %c0_i32_1 = arith.constant 0 : i32
    return %arg0, %c0_i32, %c0_i32_0 : i32, i32, i32
  }
  func.func @transform_1(%arg0: i32) -> (i32, i32, i32) {
    %c0_i32 = arith.constant 0 : i32
    %c0_i32_0 = arith.constant 0 : i32
    %c0_i32_1 = arith.constant 0 : i32
    return %arg0, %c0_i32, %c0_i32_0 : i32, i32, i32
  }
  func.func @transform_2(%arg0: i32) -> (i32, i32, i32) {
    %c0_i32 = arith.constant 0 : i32
    %c0_i32_0 = arith.constant 0 : i32
    %c0_i32_1 = arith.constant 0 : i32
    return %arg0, %c0_i32, %c0_i32_0 : i32, i32, i32
  }
  func.func @transform_3(%arg0: i32) -> (i32, i32, i32) {
    %c0_i32 = arith.constant 0 : i32
    %c0_i32_0 = arith.constant 0 : i32
    %c0_i32_1 = arith.constant 0 : i32
    return %arg0, %c0_i32, %c0_i32_0 : i32, i32, i32
  }
  func.func @transform_4(%arg0: i32) -> (i32, i32, i32) {
    %c0_i32 = arith.constant 0 : i32
    %c0_i32_0 = arith.constant 0 : i32
    %c0_i32_1 = arith.constant 0 : i32
    return %arg0, %c0_i32, %c0_i32_0 : i32, i32, i32
  }
  func.func @transform_5(%arg0: i32) -> (i32, i32, i32) {
    %c0_i32 = arith.constant 0 : i32
    %c0_i32_0 = arith.constant 0 : i32
    %c0_i32_1 = arith.constant 0 : i32
    return %arg0, %c0_i32, %c0_i32_0 : i32, i32, i32
  }
}

</mosaic_0001>

<llo_original>
// kernel: tpu_custom_call.1
$region0: #{tpu_custom_call.1}
  #allocation0 [shape = 'u32[]', space=smem, size = 0x4, offset = 0x4, fixed_abs, tag = 'smem constant byte address 0x4 - core index']
  #allocation1 [shape = 'u32[72,128]{1,0:T(1,128)}', space=vmem, size = 0x9000, scoped, tag = 'internal scratch']
  %s0 = inlined_call_operand.vmem [shape: f32[32,2,4], index: 0, kind: input, shape index: {}]
  %s1 = inlined_call_operand.vmem [shape: f32[32,2,4], index: 1, kind: input, shape index: {}]
  %s2 = inlined_call_operand.vmem [shape: f32[32,4,4], index: 2, kind: input, shape index: {}]
  %s3 = inlined_call_operand.vmem [shape: f32[32,4,4], index: 3, kind: input, shape index: {}]
  %s4 = inlined_call_operand.vmem [shape: f32[32,2,4], index: 4, kind: output, shape index: {0}]
  %s5 = inlined_call_operand.vmem [shape: f32[32,2,4], index: 5, kind: output, shape index: {1}]
  %6 = xla_tuple %s4, %s5
  %s7 = sld [smem:[#allocation0]]
  $region57: #{tpu_custom_call.1} parent=0
    _
  %s9 = ssub.s32 1, %s7
  %s10 = scalar_select 0, %s9, %s7
  loop: start=0, step=1, limit=10
  $region2: #{tpu_custom_call.1} parent=0 // loop_pre_header
    _
  $region3: #{tpu_custom_call.1} parent=0 // loop_header
    %s12 = sphi 0, %s16
    %p13 = scmp.ge.s32.totalorder %s12, 10
    %s22 = sphi 0, %s24
    %s25 = sphi 0, %s22
    %s26 = sphi 0, %s25
    %s42 = sphi 0, %s26
    %s48 = sphi 0, %s50
    %s51 = sphi 0, %s48
    %s52 = sphi 0, %s51
    %s68 = sphi 0, %s52
    %s74 = sphi 0, %s76
    %s77 = sphi 0, %s74
    %s78 = sphi 0, %s77
    %s94 = sphi 0, %s78
    %s100 = sphi 0, %s102
    %s103 = sphi 0, %s100
    %s104 = sphi 0, %s103
    %s120 = sphi 0, %s104
    %s126 = sphi 0, %s128
    %s129 = sphi 0, %s126
    %s130 = sphi 0, %s129
    %s146 = sphi 0, %s130
    %s152 = sphi 0, %s154
    %s155 = sphi 0, %s152
    %s156 = sphi 0, %s155
    %s172 = sphi 0, %s156
  $region4: #{tpu_custom_call.1} parent=0 // loop_header_branch
    %15 = sbr.rel (%p13) target = $region8
  $region5: #{tpu_custom_call.1} parent=0 // loop_body
    %s17 = ssub.s32 %s12, 1
    %s18 = ssub.s32 %s12, 2
    %s19 = sadd.s32 %s12, 1
    %s20 = ssub.s32 %s12, %s19
    %p21 = scmp.eq.s32.totalorder %s20, 0
    %s23 = sadd.s32 %s22, 1
    %s24 = scalar_select %p21, %s22, %s23
    %p27 = pneg %p21
    %p28 = scmp.eq.s32.totalorder %s12, 7
    %p29 = por %p27, %p28
    %p30 = scmp.ne.s32.totalorder %s22, %s25
    %p31 = scmp.eq.s32.totalorder %s12, 0
    %p32 = por %p30, %p31
    %p33 = scmp.ne.s32.totalorder %s22, %s25
    %p34 = scmp.eq.s32.totalorder %s17, 7
    %p35 = por %p33, %p34
    %p36 = scmp.ne.s32.totalorder %s25, %s26
    %p37 = scmp.eq.s32.totalorder %s17, 0
    %p38 = por %p36, %p37
    %p39 = scmp.ne.s32.totalorder %s25, %s26
    %p40 = scmp.eq.s32.totalorder %s18, 7
    %p41 = por %p39, %p40
    %p43 = scmp.ne.s32.totalorder %s26, %s42
    %p44 = scmp.eq.s32.totalorder %s18, 0
    %p45 = por %p43, %p44
    %s46 = ssub.s32 %s12, %s19
    %p47 = scmp.eq.s32.totalorder %s46, 0
    %s49 = sadd.s32 %s48, 1
    %s50 = scalar_select %p47, %s48, %s49
    %p53 = pneg %p47
    %p54 = scmp.eq.s32.totalorder %s12, 7
    %p55 = por %p53, %p54
    %p56 = scmp.ne.s32.totalorder %s48, %s51
    %p57 = scmp.eq.s32.totalorder %s12, 0
    %p58 = por %p56, %p57
    %p59 = scmp.ne.s32.totalorder %s48, %s51
    %p60 = scmp.eq.s32.totalorder %s17, 7
    %p61 = por %p59, %p60
    %p62 = scmp.ne.s32.totalorder %s51, %s52
    %p63 = scmp.eq.s32.totalorder %s17, 0
    %p64 = por %p62, %p63
    %p65 = scmp.ne.s32.totalorder %s51, %s52
    %p66 = scmp.eq.s32.totalorder %s18, 7
    %p67 = por %p65, %p66
    %p69 = scmp.ne.s32.totalorder %s52, %s68
    %p70 = scmp.eq.s32.totalorder %s18, 0
    %p71 = por %p69, %p70
    %s72 = ssub.s32 %s12, %s19
    %p73 = scmp.eq.s32.totalorder %s72, 0
    %s75 = sadd.s32 %s74, 1
    %s76 = scalar_select %p73, %s74, %s75
    %p79 = pneg %p73
    %p80 = scmp.eq.s32.totalorder %s12, 7
    %p81 = por %p79, %p80
    %p82 = scmp.ne.s32.totalorder %s74, %s77
    %p83 = scmp.eq.s32.totalorder %s12, 0
    %p84 = por %p82, %p83
    %p85 = scmp.ne.s32.totalorder %s74, %s77
    %p86 = scmp.eq.s32.totalorder %s17, 7
    %p87 = por %p85, %p86
    %p88 = scmp.ne.s32.totalorder %s77, %s78
    %p89 = scmp.eq.s32.totalorder %s17, 0
    %p90 = por %p88, %p89
    %p91 = scmp.ne.s32.totalorder %s77, %s78
    %p92 = scmp.eq.s32.totalorder %s18, 7
    %p93 = por %p91, %p92
    %p95 = scmp.ne.s32.totalorder %s78, %s94
    %p96 = scmp.eq.s32.totalorder %s18, 0
    %p97 = por %p95, %p96
    %s98 = ssub.s32 %s12, %s19
    %p99 = scmp.eq.s32.totalorder %s98, 0
    %s101 = sadd.s32 %s100, 1
    %s102 = scalar_select %p99, %s100, %s101
    %p105 = pneg %p99
    %p106 = scmp.eq.s32.totalorder %s12, 7
    %p107 = por %p105, %p106
    %p108 = scmp.ne.s32.totalorder %s100, %s103
    %p109 = scmp.eq.s32.totalorder %s12, 0
    %p110 = por %p108, %p109
    %p111 = scmp.ne.s32.totalorder %s100, %s103
    %p112 = scmp.eq.s32.totalorder %s17, 7
    %p113 = por %p111, %p112
    %p114 = scmp.ne.s32.totalorder %s103, %s104
    %p115 = scmp.eq.s32.totalorder %s17, 0
    %p116 = por %p114, %p115
    %p117 = scmp.ne.s32.totalorder %s103, %s104
    %p118 = scmp.eq.s32.totalorder %s18, 7
    %p119 = por %p117, %p118
    %p121 = scmp.ne.s32.totalorder %s104, %s120
    %p122 = scmp.eq.s32.totalorder %s18, 0
    %p123 = por %p121, %p122
    %s124 = ssub.s32 %s12, %s19
    %p125 = scmp.eq.s32.totalorder %s124, 0
    %s127 = sadd.s32 %s126, 1
    %s128 = scalar_select %p125, %s126, %s127
    %p131 = pneg %p125
    %p132 = scmp.eq.s32.totalorder %s12, 7
    %p133 = por %p131, %p132
    %p134 = scmp.ne.s32.totalorder %s126, %s129
    %p135 = scmp.eq.s32.totalorder %s12, 0
    %p136 = por %p134, %p135
    %p137 = scmp.ne.s32.totalorder %s126, %s129
    %p138 = scmp.eq.s32.totalorder %s17, 7
    %p139 = por %p137, %p138
    %p140 = scmp.ne.s32.totalorder %s129, %s130
    %p141 = scmp.eq.s32.totalorder %s17, 0
    %p142 = por %p140, %p141
    %p143 = scmp.ne.s32.totalorder %s129, %s130
    %p144 = scmp.eq.s32.totalorder %s18, 7
    %p145 = por %p143, %p144
    %p147 = scmp.ne.s32.totalorder %s130, %s146
    %p148 = scmp.eq.s32.totalorder %s18, 0
    %p149 = por %p147, %p148
    %s150 = ssub.s32 %s12, %s19
    %p151 = scmp.eq.s32.totalorder %s150, 0
    %s153 = sadd.s32 %s152, 1
    %s154 = scalar_select %p151, %s152, %s153
    %p157 = pneg %p151
    %p158 = scmp.eq.s32.totalorder %s12, 7
    %p159 = por %p157, %p158
    %p160 = scmp.ne.s32.totalorder %s152, %s155
    %p161 = scmp.eq.s32.totalorder %s12, 0
    %p162 = por %p160, %p161
    %p163 = scmp.ne.s32.totalorder %s152, %s155
    %p164 = scmp.eq.s32.totalorder %s17, 7
    %p165 = por %p163, %p164
    %p166 = scmp.ne.s32.totalorder %s155, %s156
    %p167 = scmp.eq.s32.totalorder %s17, 0
    %p168 = por %p166, %p167
    %p169 = scmp.ne.s32.totalorder %s155, %s156
    %p170 = scmp.eq.s32.totalorder %s18, 7
    %p171 = por %p169, %p170
    %p173 = scmp.ne.s32.totalorder %s156, %s172
    %p174 = scmp.eq.s32.totalorder %s18, 0
    %p175 = por %p173, %p174
    %p176 = scmp.le.s32.totalorder 1, %s12
    %p177 = scmp.lt.s32.totalorder %s12, 9
    %p178 = pnand %p176, %p177
    %p179 = pneg %p178
    // Predicated region
    $region9: #{tpu_custom_call.1} parent=5 // pred_check
      _
    $region10: #{tpu_custom_call.1} parent=5 // pred_check_branch
      %181 = sbr.rel (%p178) target = $region12
    $region11: #{tpu_custom_call.1} parent=5 // pred_region
      %s182 = ssub.s32 %s12, 1
    $region12: #{tpu_custom_call.1} parent=5 // pred_fallthru
      _
    %p183 = scmp.lt.s32.totalorder %s12, 8
    // Predicated region
    $region13: #{tpu_custom_call.1} parent=5 // pred_check
      %p184 = pneg %p183
    $region14: #{tpu_custom_call.1} parent=5 // pred_check_branch
      %186 = sbr.rel (%p184) target = $region16
    $region15: #{tpu_custom_call.1} parent=5 // pred_region
      // Predicated region
      $region17: #{tpu_custom_call.1} parent=15 // pred_check
        %p187 = pneg %p32
      $region18: #{tpu_custom_call.1} parent=15 // pred_check_branch
        %189 = sbr.rel (%p187) target = $region20
      $region19: #{tpu_custom_call.1} parent=15 // pred_region
        %s190 = smul.u32 4, %s12
        %p191 = scmp.lt.s32.totalorder %s190, 31
        %s192 = scalar_select %p191, %s190, 31
        %s193 = smul.addr %s192, 2
        %s194 = scalar_lea.vmem %s0, %s193
        %s195 = smul.u32 4, %s12
      $region20: #{tpu_custom_call.1} parent=15 // pred_fallthru
        _
      // Predicated region
      $region21: #{tpu_custom_call.1} parent=15 // pred_check
        %p196 = pneg %p58
      $region22: #{tpu_custom_call.1} parent=15 // pred_check_branch
        %198 = sbr.rel (%p196) target = $region24
      $region23: #{tpu_custom_call.1} parent=15 // pred_region
        %s199 = smul.u32 4, %s12
        %p200 = scmp.lt.s32.totalorder %s199, 31
        %s201 = scalar_select %p200, %s199, 31
        %s202 = smul.addr %s201, 2
        %s203 = scalar_lea.vmem %s1, %s202
        %s204 = smul.u32 4, %s12
      $region24: #{tpu_custom_call.1} parent=15 // pred_fallthru
        _
      // Predicated region
      $region25: #{tpu_custom_call.1} parent=15 // pred_check
        %p205 = pneg %p84
      $region26: #{tpu_custom_call.1} parent=15 // pred_check_branch
        %207 = sbr.rel (%p205) target = $region28
      $region27: #{tpu_custom_call.1} parent=15 // pred_region
        %s208 = smul.u32 4, %s12
        %p209 = scmp.lt.s32.totalorder %s208, 31
        %s210 = scalar_select %p209, %s208, 31
        %s211 = smul.addr %s210, 4
        %s212 = scalar_lea.vmem %s2, %s211
        %s213 = smul.u32 4, %s12
      $region28: #{tpu_custom_call.1} parent=15 // pred_fallthru
        _
      // Predicated region
      $region29: #{tpu_custom_call.1} parent=15 // pred_check
        %p214 = pneg %p110
      $region30: #{tpu_custom_call.1} parent=15 // pred_check_branch
        %216 = sbr.rel (%p214) target = $region32
      $region31: #{tpu_custom_call.1} parent=15 // pred_region
        %s217 = smul.u32 4, %s12
        %p218 = scmp.lt.s32.totalorder %s217, 31
        %s219 = scalar_select %p218, %s217, 31
        %s220 = smul.addr %s219, 4
        %s221 = scalar_lea.vmem %s3, %s220
        %s222 = smul.u32 4, %s12
      $region32: #{tpu_custom_call.1} parent=15 // pred_fallthru
        _
    $region16: #{tpu_custom_call.1} parent=5 // pred_fallthru
      _
    %p223 = scmp.le.s32.totalorder 1, %s12
    %p224 = scmp.lt.s32.totalorder %s12, 9
    %p225 = pnand %p223, %p224
    %p226 = pneg %p225
    // Predicated region
    $region33: #{tpu_custom_call.1} parent=5 // pred_check
      _
    $region34: #{tpu_custom_call.1} parent=5 // pred_check_branch
      %228 = sbr.rel (%p225) target = $region36
    $region35: #{tpu_custom_call.1} parent=5 // pred_region
      %s229 = ssub.s32 %s12, 1
      %s230 = smul.u32 4, %s17
      %p231 = scmp.lt.s32.totalorder %s230, 31
      %s232 = scalar_select %p231, %s230, 31
      %s233 = smul.addr %s232, 2
      %s234 = scalar_lea.vmem %s0, %s233
      %p235 = pneg %p38
      %p236 = pneg %p35
      %s237 = smul.u32 4, %s17
      %p238 = scmp.lt.s32.totalorder %s237, 31
      %s239 = scalar_select %p238, %s237, 31
      %s240 = smul.addr %s239, 2
      %s241 = scalar_lea.vmem %s1, %s240
      %p242 = pneg %p64
      %p243 = pneg %p61
      %s244 = smul.u32 4, %s17
      %p245 = scmp.lt.s32.totalorder %s244, 31
      %s246 = scalar_select %p245, %s244, 31
      %s247 = smul.addr %s246, 4
      %s248 = scalar_lea.vmem %s2, %s247
      %p249 = pneg %p90
      %p250 = pneg %p87
      %s251 = smul.u32 4, %s17
      %p252 = scmp.lt.s32.totalorder %s251, 31
      %s253 = scalar_select %p252, %s251, 31
      %s254 = smul.addr %s253, 4
      %s255 = scalar_lea.vmem %s3, %s254
      %p256 = pneg %p116
      %p257 = pneg %p113
      %p258 = pneg %p142
      %p259 = pneg %p139
      %s260 = smul.u32 4, %s17
      %p261 = scmp.lt.s32.totalorder %s260, 31
      %s262 = scalar_select %p261, %s260, 31
      %s263 = smul.addr %s262, 2
      %s264 = scalar_lea.vmem %s4, %s263
      %p265 = pneg %p168
      %p266 = pneg %p165
      %s267 = smul.u32 4, %s17
      %p268 = scmp.lt.s32.totalorder %s267, 31
      %s269 = scalar_select %p268, %s267, 31
      %s270 = smul.addr %s269, 2
      %s271 = scalar_lea.vmem %s5, %s270
      %s272 = smul.u32 4, %s17
      %p273 = scmp.lt.s32.totalorder %s272, 31
      %s274 = scalar_select %p273, %s272, 31
      %s275 = smul.addr %s274, 2
      %s276 = scalar_lea.vmem %s0, %s275
      %s277 = smul.u32 4, %s17
      %s278 = smul.u32 4, %s17
      %p279 = scmp.lt.s32.totalorder %s278, 31
      %s280 = scalar_select %p279, %s278, 31
      %s281 = smul.addr %s280, 2
      %s282 = scalar_lea.vmem %s1, %s281
      %s283 = smul.u32 4, %s17
      %s284 = smul.u32 4, %s17
      %p285 = scmp.lt.s32.totalorder %s284, 31
      %s286 = scalar_select %p285, %s284, 31
      %s287 = smul.addr %s286, 4
      %s288 = scalar_lea.vmem %s2, %s287
      %s289 = smul.u32 4, %s17
      %s290 = smul.u32 4, %s17
      %p291 = scmp.lt.s32.totalorder %s290, 31
      %s292 = scalar_select %p291, %s290, 31
      %s293 = smul.addr %s292, 4
      %s294 = scalar_lea.vmem %s3, %s293
      %s295 = smul.u32 4, %s17
      %s296 = smul.u32 4, %s17
      %p297 = scmp.lt.s32.totalorder %s296, 31
      %s298 = scalar_select %p297, %s296, 31
      %s299 = smul.addr %s298, 2
      %s300 = scalar_lea.vmem %s4, %s299
      %s301 = smul.u32 4, %s17
      %s302 = smul.u32 4, %s17
      %p303 = scmp.lt.s32.totalorder %s302, 31
      %s304 = scalar_select %p303, %s302, 31
      %s305 = smul.addr %s304, 2
      %s306 = scalar_lea.vmem %s5, %s305
      %s307 = smul.u32 4, %s17
      %v308 = vld [vmem:[%s276] sm:$0x3]
      %v309 = vld [vmem:[%s276 + $0x2] sm:$0x3]
      %v310 = vld [vmem:[%s276 + $0x4] sm:$0x3]
      %v311 = vld [vmem:[%s276 + $0x6] sm:$0x3]
      %v312 = vld [vmem:[%s282] sm:$0x3]
      %v313 = vld [vmem:[%s282 + $0x2] sm:$0x3]
      %v314 = vld [vmem:[%s282 + $0x4] sm:$0x3]
      %v315 = vld [vmem:[%s282 + $0x6] sm:$0x3]
      %v316 = vld [vmem:[%s288] sm:$0xf]
      %v317 = vld [vmem:[%s288 + $0x4] sm:$0xf]
      %v318 = vld [vmem:[%s288 + $0x8] sm:$0xf]
      %v319 = vld [vmem:[%s288 + $0xc] sm:$0xf]
      %v320 = vld [vmem:[%s294] sm:$0xf]
      %v321 = vld [vmem:[%s294 + $0x4] sm:$0xf]
      %v322 = vld [vmem:[%s294 + $0x8] sm:$0xf]
      %v323 = vld [vmem:[%s294 + $0xc] sm:$0xf]
      %vm324 = vcmask 31744
      %v326 = vsel %vm324, %v308, 0
      %vm328 = vcmask 1043456
      %v330 = vsel %vm328, %v316, 0
      %332 = vmatpush.msra.mxu0 0.0
      %333 = vmatpush.msra.mxu0 0.0
      %334 = vmatpush.msra.mxu0 0.0
      %335 = vmatpush.msra.mxu0 0.0
      %336 = vmatpush.msra.mxu0 0.0
      %337 = vmatpush.msra.mxu0 0.0
      %338 = vmatpush.msra.mxu0 0.0
      %339 = vmatpush.msra.mxu0 0.0
      %340 = vmatpush.msra.mxu0 0.0
      %341 = vmatpush.msra.mxu0 0.0
      %342 = vmatpush.msra.mxu0 0.0
      %343 = vmatpush.msra.mxu0 0.0
      %344 = vmatpush.msra.mxu0 0.0
      %345 = vmatpush.msra.mxu0 0.0
      %346 = vmatpush.msra.mxu0 0.0
      %347 = vmatpush.msra.mxu0 %v330
      %348 = vmatmul.f32.gmra.mxu0 %v326
      %v349 = vpop.f32.mrf.mxu0
      %v350 = vadd.f32 0.0, %v349
      %351 = vdwg.mxu0
      %v353 = vsel %vm324, %v309, 0
      %v356 = vsel %vm328, %v317, 0
      %358 = vmatpush.msra.mxu0 0.0
      %359 = vmatpush.msra.mxu0 0.0
      %360 = vmatpush.msra.mxu0 0.0
      %361 = vmatpush.msra.mxu0 0.0
      %362 = vmatpush.msra.mxu0 0.0
      %363 = vmatpush.msra.mxu0 0.0
      %364 = vmatpush.msra.mxu0 0.0
      %365 = vmatpush.msra.mxu0 0.0
      %366 = vmatpush.msra.mxu0 0.0
      %367 = vmatpush.msra.mxu0 0.0
      %368 = vmatpush.msra.mxu0 0.0
      %369 = vmatpush.msra.mxu0 0.0
      %370 = vmatpush.msra.mxu0 0.0
      %371 = vmatpush.msra.mxu0 0.0
      %372 = vmatpush.msra.mxu0 0.0
      %373 = vmatpush.msra.mxu0 %v356
      %374 = vmatmul.f32.gmra.mxu0 %v353
      %v375 = vpop.f32.mrf.mxu0
      %v376 = vadd.f32 0.0, %v375
      %377 = vdwg.mxu0
      %v379 = vsel %vm324, %v310, 0
      %v382 = vsel %vm328, %v318, 0
      %384 = vmatpush.msra.mxu0 0.0
      %385 = vmatpush.msra.mxu0 0.0
      %386 = vmatpush.msra.mxu0 0.0
      %387 = vmatpush.msra.mxu0 0.0
      %388 = vmatpush.msra.mxu0 0.0
      %389 = vmatpush.msra.mxu0 0.0
      %390 = vmatpush.msra.mxu0 0.0
      %391 = vmatpush.msra.mxu0 0.0
      %392 = vmatpush.msra.mxu0 0.0
      %393 = vmatpush.msra.mxu0 0.0
      %394 = vmatpush.msra.mxu0 0.0
      %395 = vmatpush.msra.mxu0 0.0
      %396 = vmatpush.msra.mxu0 0.0
      %397 = vmatpush.msra.mxu0 0.0
      %398 = vmatpush.msra.mxu0 0.0
      %399 = vmatpush.msra.mxu0 %v382
      %400 = vmatmul.f32.gmra.mxu0 %v379
      %v401 = vpop.f32.mrf.mxu0
      %v402 = vadd.f32 0.0, %v401
      %403 = vdwg.mxu0
      %v405 = vsel %vm324, %v311, 0
      %v408 = vsel %vm328, %v319, 0
      %410 = vmatpush.msra.mxu0 0.0
      %411 = vmatpush.msra.mxu0 0.0
      %412 = vmatpush.msra.mxu0 0.0
      %413 = vmatpush.msra.mxu0 0.0
      %414 = vmatpush.msra.mxu0 0.0
      %415 = vmatpush.msra.mxu0 0.0
      %416 = vmatpush.msra.mxu0 0.0
      %417 = vmatpush.msra.mxu0 0.0
      %418 = vmatpush.msra.mxu0 0.0
      %419 = vmatpush.msra.mxu0 0.0
      %420 = vmatpush.msra.mxu0 0.0
      %421 = vmatpush.msra.mxu0 0.0
      %422 = vmatpush.msra.mxu0 0.0
      %423 = vmatpush.msra.mxu0 0.0
      %424 = vmatpush.msra.mxu0 0.0
      %425 = vmatpush.msra.mxu0 %v408
      %426 = vmatmul.f32.gmra.mxu0 %v405
      %v427 = vpop.f32.mrf.mxu0
      %v428 = vadd.f32 0.0, %v427
      %429 = vdwg.mxu0
      %v431 = vsel %vm324, %v312, 0
      %v434 = vsel %vm328, %v320, 0
      %436 = vmatpush.msra.mxu0 0.0
      %437 = vmatpush.msra.mxu0 0.0
      %438 = vmatpush.msra.mxu0 0.0
      %439 = vmatpush.msra.mxu0 0.0
      %440 = vmatpush.msra.mxu0 0.0
      %441 = vmatpush.msra.mxu0 0.0
      %442 = vmatpush.msra.mxu0 0.0
      %443 = vmatpush.msra.mxu0 0.0
      %444 = vmatpush.msra.mxu0 0.0
      %445 = vmatpush.msra.mxu0 0.0
      %446 = vmatpush.msra.mxu0 0.0
      %447 = vmatpush.msra.mxu0 0.0
      %448 = vmatpush.msra.mxu0 0.0
      %449 = vmatpush.msra.mxu0 0.0
      %450 = vmatpush.msra.mxu0 0.0
      %451 = vmatpush.msra.mxu0 %v434
      %452 = vmatmul.f32.gmra.mxu0 %v431
      %v453 = vpop.f32.mrf.mxu0
      %v454 = vadd.f32 0.0, %v453
      %455 = vdwg.mxu0
      %v457 = vsel %vm324, %v313, 0
      %v460 = vsel %vm328, %v321, 0
      %462 = vmatpush.msra.mxu0 0.0
      %463 = vmatpush.msra.mxu0 0.0
      %464 = vmatpush.msra.mxu0 0.0
      %465 = vmatpush.msra.mxu0 0.0
      %466 = vmatpush.msra.mxu0 0.0
      %467 = vmatpush.msra.mxu0 0.0
      %468 = vmatpush.msra.mxu0 0.0
      %469 = vmatpush.msra.mxu0 0.0
      %470 = vmatpush.msra.mxu0 0.0
      %471 = vmatpush.msra.mxu0 0.0
      %472 = vmatpush.msra.mxu0 0.0
      %473 = vmatpush.msra.mxu0 0.0
      %474 = vmatpush.msra.mxu0 0.0
      %475 = vmatpush.msra.mxu0 0.0
      %476 = vmatpush.msra.mxu0 0.0
      %477 = vmatpush.msra.mxu0 %v460
      %478 = vmatmul.f32.gmra.mxu0 %v457
      %v479 = vpop.f32.mrf.mxu0
      %v480 = vadd.f32 0.0, %v479
      %481 = vdwg.mxu0
      %v483 = vsel %vm324, %v314, 0
      %v486 = vsel %vm328, %v322, 0
      %488 = vmatpush.msra.mxu0 0.0
      %489 = vmatpush.msra.mxu0 0.0
      %490 = vmatpush.msra.mxu0 0.0
      %491 = vmatpush.msra.mxu0 0.0
      %492 = vmatpush.msra.mxu0 0.0
      %493 = vmatpush.msra.mxu0 0.0
      %494 = vmatpush.msra.mxu0 0.0
      %495 = vmatpush.msra.mxu0 0.0
      %496 = vmatpush.msra.mxu0 0.0
      %497 = vmatpush.msra.mxu0 0.0
      %498 = vmatpush.msra.mxu0 0.0
      %499 = vmatpush.msra.mxu0 0.0
      %500 = vmatpush.msra.mxu0 0.0
      %501 = vmatpush.msra.mxu0 0.0
      %502 = vmatpush.msra.mxu0 0.0
      %503 = vmatpush.msra.mxu0 %v486
      %504 = vmatmul.f32.gmra.mxu0 %v483
      %v505 = vpop.f32.mrf.mxu0
      %v506 = vadd.f32 0.0, %v505
      %507 = vdwg.mxu0
      %v509 = vsel %vm324, %v315, 0
      %v512 = vsel %vm328, %v323, 0
      %514 = vmatpush.msra.mxu0 0.0
      %515 = vmatpush.msra.mxu0 0.0
      %516 = vmatpush.msra.mxu0 0.0
      %517 = vmatpush.msra.mxu0 0.0
      %518 = vmatpush.msra.mxu0 0.0
      %519 = vmatpush.msra.mxu0 0.0
      %520 = vmatpush.msra.mxu0 0.0
      %521 = vmatpush.msra.mxu0 0.0
      %522 = vmatpush.msra.mxu0 0.0
      %523 = vmatpush.msra.mxu0 0.0
      %524 = vmatpush.msra.mxu0 0.0
      %525 = vmatpush.msra.mxu0 0.0
      %526 = vmatpush.msra.mxu0 0.0
      %527 = vmatpush.msra.mxu0 0.0
      %528 = vmatpush.msra.mxu0 0.0
      %529 = vmatpush.msra.mxu0 %v512
      %530 = vmatmul.f32.gmra.mxu0 %v509
      %v531 = vpop.f32.mrf.mxu0
      %v532 = vadd.f32 0.0, %v531
      %533 = vdwg.mxu0
      %534 = vmatpush.msra.mxu0 0.0
      %535 = vmatpush.msra.mxu0 0.0
      %536 = vmatpush.msra.mxu0 0.0
      %537 = vmatpush.msra.mxu0 0.0
      %538 = vmatpush.msra.mxu0 0.0
      %539 = vmatpush.msra.mxu0 0.0
      %540 = vmatpush.msra.mxu0 0.0
      %541 = vmatpush.msra.mxu0 0.0
      %542 = vmatpush.msra.mxu0 0.0
      %543 = vmatpush.msra.mxu0 0.0
      %544 = vmatpush.msra.mxu0 0.0
      %545 = vmatpush.msra.mxu0 0.0
      %546 = vmatpush.msra.mxu0 0.0
      %547 = vmatpush.msra.mxu0 0.0
      %548 = vmatpush.msra.mxu0 0.0
      %549 = vmatpush.msra.mxu0 %v330
      %550 = vmatmul.f32.gmra.mxu0 %v431
      %v551 = vpop.f32.mrf.mxu0
      %v552 = vadd.f32 0.0, %v551
      %553 = vdwg.mxu0
      %554 = vmatpush.msra.mxu0 0.0
      %555 = vmatpush.msra.mxu0 0.0
      %556 = vmatpush.msra.mxu0 0.0
      %557 = vmatpush.msra.mxu0 0.0
      %558 = vmatpush.msra.mxu0 0.0
      %559 = vmatpush.msra.mxu0 0.0
      %560 = vmatpush.msra.mxu0 0.0
      %561 = vmatpush.msra.mxu0 0.0
      %562 = vmatpush.msra.mxu0 0.0
      %563 = vmatpush.msra.mxu0 0.0
      %564 = vmatpush.msra.mxu0 0.0
      %565 = vmatpush.msra.mxu0 0.0
      %566 = vmatpush.msra.mxu0 0.0
      %567 = vmatpush.msra.mxu0 0.0
      %568 = vmatpush.msra.mxu0 0.0
      %569 = vmatpush.msra.mxu0 %v356
      %570 = vmatmul.f32.gmra.mxu0 %v457
      %v571 = vpop.f32.mrf.mxu0
      %v572 = vadd.f32 0.0, %v571
      %573 = vdwg.mxu0
      %574 = vmatpush.msra.mxu0 0.0
      %575 = vmatpush.msra.mxu0 0.0
      %576 = vmatpush.msra.mxu0 0.0
      %577 = vmatpush.msra.mxu0 0.0
      %578 = vmatpush.msra.mxu0 0.0
      %579 = vmatpush.msra.mxu0 0.0
      %580 = vmatpush.msra.mxu0 0.0
      %581 = vmatpush.msra.mxu0 0.0
      %582 = vmatpush.msra.mxu0 0.0
      %583 = vmatpush.msra.mxu0 0.0
      %584 = vmatpush.msra.mxu0 0.0
      %585 = vmatpush.msra.mxu0 0.0
      %586 = vmatpush.msra.mxu0 0.0
      %587 = vmatpush.msra.mxu0 0.0
      %588 = vmatpush.msra.mxu0 0.0
      %589 = vmatpush.msra.mxu0 %v382
      %590 = vmatmul.f32.gmra.mxu0 %v483
      %v591 = vpop.f32.mrf.mxu0
      %v592 = vadd.f32 0.0, %v591
      %593 = vdwg.mxu0
      %594 = vmatpush.msra.mxu0 0.0
      %595 = vmatpush.msra.mxu0 0.0
      %596 = vmatpush.msra.mxu0 0.0
      %597 = vmatpush.msra.mxu0 0.0
      %598 = vmatpush.msra.mxu0 0.0
      %599 = vmatpush.msra.mxu0 0.0
      %600 = vmatpush.msra.mxu0 0.0
      %601 = vmatpush.msra.mxu0 0.0
      %602 = vmatpush.msra.mxu0 0.0
      %603 = vmatpush.msra.mxu0 0.0
      %604 = vmatpush.msra.mxu0 0.0
      %605 = vmatpush.msra.mxu0 0.0
      %606 = vmatpush.msra.mxu0 0.0
      %607 = vmatpush.msra.mxu0 0.0
      %608 = vmatpush.msra.mxu0 0.0
      %609 = vmatpush.msra.mxu0 %v408
      %610 = vmatmul.f32.gmra.mxu0 %v509
      %v611 = vpop.f32.mrf.mxu0
      %v612 = vadd.f32 0.0, %v611
      %613 = vdwg.mxu0
      %v614 = vsub.f32 %v350, %v454
      %v615 = vsub.f32 %v376, %v480
      %v616 = vsub.f32 %v402, %v506
      %v617 = vsub.f32 %v428, %v532
      %vm618 = vcmask 25600
      %619 = vst.msk [vmem:[%s300] sm:$0x3] %vm618, %v614
      %620 = vst.msk [vmem:[%s300 + $0x2] sm:$0x3] %vm618, %v615
      %621 = vst.msk [vmem:[%s300 + $0x4] sm:$0x3] %vm618, %v616
      %622 = vst.msk [vmem:[%s300 + $0x6] sm:$0x3] %vm618, %v617
      %623 = vmatpush.msra.mxu0 0.0
      %624 = vmatpush.msra.mxu0 0.0
      %625 = vmatpush.msra.mxu0 0.0
      %626 = vmatpush.msra.mxu0 0.0
      %627 = vmatpush.msra.mxu0 0.0
      %628 = vmatpush.msra.mxu0 0.0
      %629 = vmatpush.msra.mxu0 0.0
      %630 = vmatpush.msra.mxu0 0.0
      %631 = vmatpush.msra.mxu0 0.0
      %632 = vmatpush.msra.mxu0 0.0
      %633 = vmatpush.msra.mxu0 0.0
      %634 = vmatpush.msra.mxu0 0.0
      %635 = vmatpush.msra.mxu0 0.0
      %636 = vmatpush.msra.mxu0 0.0
      %637 = vmatpush.msra.mxu0 0.0
      %638 = vmatpush.msra.mxu0 %v434
      %639 = vmatmul.f32.gmra.mxu0 %v326
      %v640 = vpop.f32.mrf.mxu0
      %v641 = vadd.f32 %v552, %v640
      %642 = vdwg.mxu0
      %643 = vmatpush.msra.mxu0 0.0
      %644 = vmatpush.msra.mxu0 0.0
      %645 = vmatpush.msra.mxu0 0.0
      %646 = vmatpush.msra.mxu0 0.0
      %647 = vmatpush.msra.mxu0 0.0
      %648 = vmatpush.msra.mxu0 0.0
      %649 = vmatpush.msra.mxu0 0.0
      %650 = vmatpush.msra.mxu0 0.0
      %651 = vmatpush.msra.mxu0 0.0
      %652 = vmatpush.msra.mxu0 0.0
      %653 = vmatpush.msra.mxu0 0.0
      %654 = vmatpush.msra.mxu0 0.0
      %655 = vmatpush.msra.mxu0 0.0
      %656 = vmatpush.msra.mxu0 0.0
      %657 = vmatpush.msra.mxu0 0.0
      %658 = vmatpush.msra.mxu0 %v460
      %659 = vmatmul.f32.gmra.mxu0 %v353
      %v660 = vpop.f32.mrf.mxu0
      %v661 = vadd.f32 %v572, %v660
      %662 = vdwg.mxu0
      %663 = vmatpush.msra.mxu0 0.0
      %664 = vmatpush.msra.mxu0 0.0
      %665 = vmatpush.msra.mxu0 0.0
      %666 = vmatpush.msra.mxu0 0.0
      %667 = vmatpush.msra.mxu0 0.0
      %668 = vmatpush.msra.mxu0 0.0
      %669 = vmatpush.msra.mxu0 0.0
      %670 = vmatpush.msra.mxu0 0.0
      %671 = vmatpush.msra.mxu0 0.0
      %672 = vmatpush.msra.mxu0 0.0
      %673 = vmatpush.msra.mxu0 0.0
      %674 = vmatpush.msra.mxu0 0.0
      %675 = vmatpush.msra.mxu0 0.0
      %676 = vmatpush.msra.mxu0 0.0
      %677 = vmatpush.msra.mxu0 0.0
      %678 = vmatpush.msra.mxu0 %v486
      %679 = vmatmul.f32.gmra.mxu0 %v379
      %v680 = vpop.f32.mrf.mxu0
      %v681 = vadd.f32 %v592, %v680
      %682 = vdwg.mxu0
      %683 = vmatpush.msra.mxu0 0.0
      %684 = vmatpush.msra.mxu0 0.0
      %685 = vmatpush.msra.mxu0 0.0
      %686 = vmatpush.msra.mxu0 0.0
      %687 = vmatpush.msra.mxu0 0.0
      %688 = vmatpush.msra.mxu0 0.0
      %689 = vmatpush.msra.mxu0 0.0
      %690 = vmatpush.msra.mxu0 0.0
      %691 = vmatpush.msra.mxu0 0.0
      %692 = vmatpush.msra.mxu0 0.0
      %693 = vmatpush.msra.mxu0 0.0
      %694 = vmatpush.msra.mxu0 0.0
      %695 = vmatpush.msra.mxu0 0.0
      %696 = vmatpush.msra.mxu0 0.0
      %697 = vmatpush.msra.mxu0 0.0
      %698 = vmatpush.msra.mxu0 %v512
      %699 = vmatmul.f32.gmra.mxu0 %v405
      %v700 = vpop.f32.mrf.mxu0
      %v701 = vadd.f32 %v612, %v700
      %702 = vdwg.mxu0
      %703 = vst.msk [vmem:[%s306] sm:$0x3] %vm618, %v641
      %704 = vst.msk [vmem:[%s306 + $0x2] sm:$0x3] %vm618, %v661
      %705 = vst.msk [vmem:[%s306 + $0x4] sm:$0x3] %vm618, %v681
      %706 = vst.msk [vmem:[%s306 + $0x6] sm:$0x3] %vm618, %v701
      %s707 = smul.u32 4, %s17
      %p708 = scmp.lt.s32.totalorder %s707, 31
      %s709 = scalar_select %p708, %s707, 31
      %s710 = smul.addr %s709, 2
      %s711 = scalar_lea.vmem %s4, %s710
      %s712 = smul.u32 4, %s17
      %p713 = scmp.lt.s32.totalorder %s712, 31
      %s714 = scalar_select %p713, %s712, 31
      %s715 = smul.addr %s714, 2
      %s716 = scalar_lea.vmem %s5, %s715
      // Predicated region
      $region37: #{tpu_custom_call.1} parent=35 // pred_check
        %p717 = pneg %p139
      $region38: #{tpu_custom_call.1} parent=35 // pred_check_branch
        %719 = sbr.rel (%p717) target = $region40
      $region39: #{tpu_custom_call.1} parent=35 // pred_region
        %s720 = smul.u32 4, %s17
      $region40: #{tpu_custom_call.1} parent=35 // pred_fallthru
        _
      // Predicated region
      $region41: #{tpu_custom_call.1} parent=35 // pred_check
        %p721 = pneg %p165
      $region42: #{tpu_custom_call.1} parent=35 // pred_check_branch
        %723 = sbr.rel (%p721) target = $region44
      $region43: #{tpu_custom_call.1} parent=35 // pred_region
        %s724 = smul.u32 4, %s17
      $region44: #{tpu_custom_call.1} parent=35 // pred_fallthru
        _
    $region36: #{tpu_custom_call.1} parent=5 // pred_fallthru
      _
    %p725 = scmp.le.s32.totalorder 2, %s12
    // Predicated region
    $region45: #{tpu_custom_call.1} parent=5 // pred_check
      %p726 = pneg %p725
    $region46: #{tpu_custom_call.1} parent=5 // pred_check_branch
      %728 = sbr.rel (%p726) target = $region48
    $region47: #{tpu_custom_call.1} parent=5 // pred_region
      %s729 = ssub.s32 %s12, 2
      // Predicated region
      $region49: #{tpu_custom_call.1} parent=47 // pred_check
        %p730 = pneg %p145
      $region50: #{tpu_custom_call.1} parent=47 // pred_check_branch
        %732 = sbr.rel (%p730) target = $region52
      $region51: #{tpu_custom_call.1} parent=47 // pred_region
        %s733 = smul.u32 4, %s18
        %p734 = scmp.lt.s32.totalorder %s733, 31
        %s735 = scalar_select %p734, %s733, 31
        %s736 = smul.addr %s735, 2
        %s737 = scalar_lea.vmem %s4, %s736
      $region52: #{tpu_custom_call.1} parent=47 // pred_fallthru
        _
      // Predicated region
      $region53: #{tpu_custom_call.1} parent=47 // pred_check
        %p738 = pneg %p171
      $region54: #{tpu_custom_call.1} parent=47 // pred_check_branch
        %740 = sbr.rel (%p738) target = $region56
      $region55: #{tpu_custom_call.1} parent=47 // pred_region
        %s741 = smul.u32 4, %s18
        %p742 = scmp.lt.s32.totalorder %s741, 31
        %s743 = scalar_select %p742, %s741, 31
        %s744 = smul.addr %s743, 2
        %s745 = scalar_lea.vmem %s5, %s744
      $region56: #{tpu_custom_call.1} parent=47 // pred_fallthru
        _
    $region48: #{tpu_custom_call.1} parent=5 // pred_fallthru
      _
  $region6: #{tpu_custom_call.1} parent=0 // loop_footer
    %s16 = sadd.s32 1, %s12
  $region7: #{tpu_custom_call.1} parent=0 // loop_footer_branch
    %11 = sbr.rel target = $region3
  $region8: #{tpu_custom_call.1} parent=0 // loop_exit
    _

</llo_original>
